<compile_context>
chip_gen: v5e
topology: v5e:2x2
jax: 0.10.0
libtpu: 0.0.40
codegen_flags: <defaults>
</compile_context>

<pallas_src>
import jax
import jax.numpy as jnp
from jax.experimental import pallas as pl
from jax.experimental.pallas import tpu as pltpu


# ----------------------------------------------------------------------------
# Kernel: one grid step = (whole batch, one H*W chunk)
# ----------------------------------------------------------------------------
def film_zero_kernel(x_ref, langt_ref, wg_ref, bg_ref, wb_ref, bb_ref, o_ref):
    """x_ref/o_ref: (B, C, HWc); langt_ref: (L, B); wg/wb: (C, L); bg/bb: (C, 1)."""
    langt = langt_ref[...]                                    # (L, B)

    # FiLM linears, computed once for the whole batch, already transposed so
    # channels land on the sublane axis (matching x's (C, HW) tiles).
    gamma_t = (jnp.dot(wg_ref[...], langt,
                       preferred_element_type=jnp.float32)
               + bg_ref[...] + 1.0)                           # (C, B), (1 + gamma)
    beta_t = (jnp.dot(wb_ref[...], langt,
                      preferred_element_type=jnp.float32)
              + bb_ref[...])                                  # (C, B)

    batch = x_ref.shape[0]
    for b in range(batch):                                    # static, tiny (B=2)
        xb = x_ref[b].astype(jnp.float32)                     # (C, HWc)
        yb = xb * gamma_t[:, b:b + 1] + beta_t[:, b:b + 1]    # lane broadcast
        o_ref[b] = yb.astype(o_ref.dtype)


# ----------------------------------------------------------------------------
# Wrapper
# ----------------------------------------------------------------------------
def _num_spatial_chunks(hw):
    """2-way H*W split on v7x (2 TensorCores/chip); single grid step otherwise."""
    try:
        kind = jax.devices()[0].device_kind.lower().replace(" ", "")
    except Exception:
        return 1
    if ("v7" in kind or "7x" in kind) and hw % 256 == 0:
        return 2
    return 1


def film_block_zero(x_nchw, lang_emb, params):
    """FiLMBlockZero forward. x_nchw: (B,C,H,W); lang_emb: (B,L).

    params: wg/wb in PyTorch nn.Linear layout (C, L); bg/bb shape (C,).
    """
    B, C, H, W = x_nchw.shape
    L = lang_emb.shape[-1]
    HW = H * W

    x3 = x_nchw.reshape(B, C, HW)          # free view: lane axis = H*W
    lang_t = lang_emb.T                    # (L, B)
    bg = params["bg"].reshape(C, 1)
    bb = params["bb"].reshape(C, 1)

    nchunks = _num_spatial_chunks(HW)
    hwc = HW // nchunks

    cost = pl.CostEstimate(
        flops=4 * B * C * L + 2 * B * C * HW,
        transcendentals=0,
        bytes_accessed=4 * (2 * B * C * HW + L * B + 2 * C * L + 2 * C))

    out3 = pl.pallas_call(
        film_zero_kernel,
        out_shape=jax.ShapeDtypeStruct((B, C, HW), x_nchw.dtype),
        grid=(nchunks,),
        in_specs=[
            pl.BlockSpec((B, C, hwc), lambda i: (0, 0, i)),   # x, lane-dense
            pl.BlockSpec((L, B), lambda i: (0, 0)),           # lang_emb^T
            pl.BlockSpec((C, L), lambda i: (0, 0)),           # W_gamma (torch layout)
            pl.BlockSpec((C, 1), lambda i: (0, 0)),           # b_gamma
            pl.BlockSpec((C, L), lambda i: (0, 0)),           # W_beta
            pl.BlockSpec((C, 1), lambda i: (0, 0)),           # b_beta
        ],
        out_specs=pl.BlockSpec((B, C, hwc), lambda i: (0, 0, i)),
        compiler_params=pltpu.CompilerParams(
            dimension_semantics=("parallel",)),
        cost_estimate=cost,
    )(x3, lang_t, params["wg"], bg, params["wb"], bb)

    return out3.reshape(B, C, H, W)


# ----------------------------------------------------------------------------
# Pure-JAX reference + parameter construction
# ----------------------------------------------------------------------------
def film_reference(x_nchw, lang_emb, params):
    gamma = lang_emb @ params["wg"].T + params["bg"]          # (B, C)
    beta = lang_emb @ params["wb"].T + params["bb"]           # (B, C)
    return ((1.0 + gamma)[:, :, None, None] * x_nchw
            + beta[:, :, None, None])


def init_params(lang_emb_dim, num_channels, key=None):
    """key=None -> PyTorch-faithful zero init (nn.init.zeros_ on W and b)."""
    if key is None:
        z = jnp.zeros
        return dict(wg=z((num_channels, lang_emb_dim), jnp.float32),
                    bg=z((num_channels,), jnp.float32),
                    wb=z((num_channels, lang_emb_dim), jnp.float32),
                    bb=z((num_channels,), jnp.float32))
    k1, k2, k3, k4 = jax.random.split(key, 4)
    s = 1.0 / (lang_emb_dim ** 0.5)
    return dict(
        wg=s * jax.random.normal(k1, (num_channels, lang_emb_dim), jnp.float32),
        bg=s * jax.random.normal(k2, (num_channels,), jnp.float32),
        wb=s * jax.random.normal(k3, (num_channels, lang_emb_dim), jnp.float32),
        bb=s * jax.random.normal(k4, (num_channels,), jnp.float32))


if __name__ == "__main__":
    B, C, H, W = 2, 4, 16, 16
    L = 32

    key = jax.random.PRNGKey(0)
    kx, kl, kp = jax.random.split(key, 3)
    x = jax.random.normal(kx, (B, C, H, W), jnp.float32)
    lang_emb = jax.random.normal(kl, (B, L), jnp.float32)

    # 1) Module-faithful zero init: FiLMBlockZero is the identity at init.
    params0 = init_params(L, C)
    out0 = jax.block_until_ready(film_block_zero(x, lang_emb, params0))
    assert out0.shape == (B, C, H, W), out0.shape
    assert jnp.allclose(out0, x, atol=1e-6, rtol=1e-6), \
        float(jnp.max(jnp.abs(out0 - x)))

    # 2) Non-trivial weights: exercise the fused linears + modulation.
    params = init_params(L, C, key=kp)
    out = jax.block_until_ready(film_block_zero(x, lang_emb, params))
    ref = jax.block_until_ready(film_reference(x, lang_emb, params))
    assert jnp.allclose(out, ref, atol=1e-5, rtol=1e-5), \
        float(jnp.max(jnp.abs(out - ref)))

    print("KERNEL_OK")
</pallas_src>

<mosaic_0001>
module attributes {stable_mosaic.version = 11 : i64} {
  func.func @film_zero_kernel(%arg0: i32, %arg1: memref<2x4x256xf32, #tpu.memory_space<vmem>>, %arg2: memref<32x2xf32, #tpu.memory_space<vmem>>, %arg3: memref<4x32xf32, #tpu.memory_space<vmem>>, %arg4: memref<4x1xf32, #tpu.memory_space<vmem>>, %arg5: memref<4x32xf32, #tpu.memory_space<vmem>>, %arg6: memref<4x1xf32, #tpu.memory_space<vmem>>, %arg7: memref<2x4x256xf32, #tpu.memory_space<vmem>>) attributes {dimension_semantics = [#tpu.dimension_semantics<parallel>], iteration_bounds = array<i64: 1>, scalar_prefetch = 0 : i64, scratch_operands = 0 : i64, tpu.core_type = #tpu.core_type<tc>, window_params = [{transform_indices = @transform_0, window_bounds = array<i64: 2, 4, 256>}, {pipeline_mode = #tpu.pipeline_mode<synchronous>, transform_indices = @transform_1, window_bounds = array<i64: 32, 2>}, {pipeline_mode = #tpu.pipeline_mode<synchronous>, transform_indices = @transform_2, window_bounds = array<i64: 4, 32>}, {pipeline_mode = #tpu.pipeline_mode<synchronous>, transform_indices = @transform_3, window_bounds = array<i64: 4, 1>}, {pipeline_mode = #tpu.pipeline_mode<synchronous>, transform_indices = @transform_4, window_bounds = array<i64: 4, 32>}, {pipeline_mode = #tpu.pipeline_mode<synchronous>, transform_indices = @transform_5, window_bounds = array<i64: 4, 1>}, {transform_indices = @transform_6, window_bounds = array<i64: 2, 4, 256>}]} {
    %c0 = arith.constant 0 : index
    %c0_0 = arith.constant 0 : index
    %0 = vector.load %arg2[%c0, %c0_0] : memref<32x2xf32, #tpu.memory_space<vmem>>, vector<32x2xf32>
    %c0_1 = arith.constant 0 : index
    %c0_2 = arith.constant 0 : index
    %1 = vector.load %arg3[%c0_1, %c0_2] : memref<4x32xf32, #tpu.memory_space<vmem>>, vector<4x32xf32>
    %cst = arith.constant dense<0.000000e+00> : vector<4x2xf32>
    %2 = tpu.matmul %1, %0, %cst {dimension_numbers = #tpu.dot_dimension_numbers<[1], [0], [0], [1], [0, 0, 1, 1], [], []>} : vector<4x32xf32>, vector<32x2xf32>, vector<4x2xf32> -> vector<4x2xf32>
    %c0_3 = arith.constant 0 : index
    %c0_4 = arith.constant 0 : index
    %3 = vector.load %arg4[%c0_3, %c0_4] : memref<4x1xf32, #tpu.memory_space<vmem>>, vector<4x1xf32>
    %4 = vector.broadcast %3 : vector<4x1xf32> to vector<4x2xf32>
    %5 = arith.addf %2, %4 : vector<4x2xf32>
    %cst_5 = arith.constant 1.000000e+00 : f32
    %6 = vector.broadcast %cst_5 : f32 to vector<4x2xf32>
    %7 = arith.addf %5, %6 : vector<4x2xf32>
    %c0_6 = arith.constant 0 : index
    %c0_7 = arith.constant 0 : index
    %8 = vector.load %arg5[%c0_6, %c0_7] : memref<4x32xf32, #tpu.memory_space<vmem>>, vector<4x32xf32>
    %cst_8 = arith.constant dense<0.000000e+00> : vector<4x2xf32>
    %9 = tpu.matmul %8, %0, %cst_8 {dimension_numbers = #tpu.dot_dimension_numbers<[1], [0], [0], [1], [0, 0, 1, 1], [], []>} : vector<4x32xf32>, vector<32x2xf32>, vector<4x2xf32> -> vector<4x2xf32>
    %c0_9 = arith.constant 0 : index
    %c0_10 = arith.constant 0 : index
    %10 = vector.load %arg6[%c0_9, %c0_10] : memref<4x1xf32, #tpu.memory_space<vmem>>, vector<4x1xf32>
    %11 = vector.broadcast %10 : vector<4x1xf32> to vector<4x2xf32>
    %12 = arith.addf %9, %11 : vector<4x2xf32>
    %c0_11 = arith.constant 0 : index
    %c0_12 = arith.constant 0 : index
    %c0_13 = arith.constant 0 : index
    %13 = vector.load %arg1[%c0_11, %c0_12, %c0_13] : memref<2x4x256xf32, #tpu.memory_space<vmem>>, vector<1x4x256xf32>
    %14 = vector.shape_cast %13 : vector<1x4x256xf32> to vector<4x256xf32>
    %15 = vector.extract_strided_slice %7 {offsets = [0, 0], sizes = [4, 1], strides = [1, 1]} : vector<4x2xf32> to vector<4x1xf32>
    %16 = vector.broadcast %15 : vector<4x1xf32> to vector<4x256xf32>
    %17 = arith.mulf %14, %16 : vector<4x256xf32>
    %18 = vector.extract_strided_slice %12 {offsets = [0, 0], sizes = [4, 1], strides = [1, 1]} : vector<4x2xf32> to vector<4x1xf32>
    %19 = vector.broadcast %18 : vector<4x1xf32> to vector<4x256xf32>
    %20 = arith.addf %17, %19 : vector<4x256xf32>
    %c0_14 = arith.constant 0 : index
    %c0_15 = arith.constant 0 : index
    %c0_16 = arith.constant 0 : index
    %21 = vector.load %arg7[%c0_14, %c0_15, %c0_16] : memref<2x4x256xf32, #tpu.memory_space<vmem>>, vector<1x4x256xf32>
    %22 = vector.shape_cast %21 : vector<1x4x256xf32> to vector<4x256xf32>
    %23 = vector.shape_cast %20 : vector<4x256xf32> to vector<1x4x256xf32>
    tpu.vector_store %arg7[%c0_14, %c0_15, %c0_16], %23 {strides = array<i32>} : memref<2x4x256xf32, #tpu.memory_space<vmem>>, vector<1x4x256xf32>,
    %c1 = arith.constant 1 : index
    %c0_17 = arith.constant 0 : index
    %c0_18 = arith.constant 0 : index
    %24 = vector.load %arg1[%c1, %c0_17, %c0_18] : memref<2x4x256xf32, #tpu.memory_space<vmem>>, vector<1x4x256xf32>
    %25 = vector.shape_cast %24 : vector<1x4x256xf32> to vector<4x256xf32>
    %26 = vector.extract_strided_slice %7 {offsets = [0, 1], sizes = [4, 1], strides = [1, 1]} : vector<4x2xf32> to vector<4x1xf32>
    %27 = vector.broadcast %26 : vector<4x1xf32> to vector<4x256xf32>
    %28 = arith.mulf %25, %27 : vector<4x256xf32>
    %29 = vector.extract_strided_slice %12 {offsets = [0, 1], sizes = [4, 1], strides = [1, 1]} : vector<4x2xf32> to vector<4x1xf32>
    %30 = vector.broadcast %29 : vector<4x1xf32> to vector<4x256xf32>
    %31 = arith.addf %28, %30 : vector<4x256xf32>
    %c1_19 = arith.constant 1 : index
    %c0_20 = arith.constant 0 : index
    %c0_21 = arith.constant 0 : index
    %32 = vector.load %arg7[%c1_19, %c0_20, %c0_21] : memref<2x4x256xf32, #tpu.memory_space<vmem>>, vector<1x4x256xf32>
    %33 = vector.shape_cast %32 : vector<1x4x256xf32> to vector<4x256xf32>
    %34 = vector.shape_cast %31 : vector<4x256xf32> to vector<1x4x256xf32>
    tpu.vector_store %arg7[%c1_19, %c0_20, %c0_21], %34 {strides = array<i32>} : memref<2x4x256xf32, #tpu.memory_space<vmem>>, vector<1x4x256xf32>,
    return
  }
  func.func @transform_0(%arg0: i32) -> (i32, i32, i32) {
    %c0_i32 = arith.constant 0 : i32
    %c0_i32_0 = arith.constant 0 : i32
    %c0_i32_1 = arith.constant 0 : i32
    return %c0_i32, %c0_i32_0, %arg0 : i32, i32, i32
  }
  func.func @transform_1(%arg0: i32) -> (i32, i32) {
    %c0_i32 = arith.constant 0 : i32
    %c0_i32_0 = arith.constant 0 : i32
    %c0_i32_1 = arith.constant 0 : i32
    return %c0_i32, %c0_i32_0 : i32, i32
  }
  func.func @transform_2(%arg0: i32) -> (i32, i32) {
    %c0_i32 = arith.constant 0 : i32
    %c0_i32_0 = arith.constant 0 : i32
    %c0_i32_1 = arith.constant 0 : i32
    return %c0_i32, %c0_i32_0 : i32, i32
  }
  func.func @transform_3(%arg0: i32) -> (i32, i32) {
    %c0_i32 = arith.constant 0 : i32
    %c0_i32_0 = arith.constant 0 : i32
    %c0_i32_1 = arith.constant 0 : i32
    return %c0_i32, %c0_i32_0 : i32, i32
  }
  func.func @transform_4(%arg0: i32) -> (i32, i32) {
    %c0_i32 = arith.constant 0 : i32
    %c0_i32_0 = arith.constant 0 : i32
    %c0_i32_1 = arith.constant 0 : i32
    return %c0_i32, %c0_i32_0 : i32, i32
  }
  func.func @transform_5(%arg0: i32) -> (i32, i32) {
    %c0_i32 = arith.constant 0 : i32
    %c0_i32_0 = arith.constant 0 : i32
    %c0_i32_1 = arith.constant 0 : i32
    return %c0_i32, %c0_i32_0 : i32, i32
  }
  func.func @transform_6(%arg0: i32) -> (i32, i32, i32) {
    %c0_i32 = arith.constant 0 : i32
    %c0_i32_0 = arith.constant 0 : i32
    %c0_i32_1 = arith.constant 0 : i32
    return %c0_i32, %c0_i32_0, %arg0 : i32, i32, i32
  }
}

</mosaic_0001>

<llo_original>
// kernel: tpu_custom_call.1
$region0: #{tpu_custom_call.1}
  #allocation0 [shape = 'u32[]', space=smem, size = 0x4, offset = 0x4, fixed_abs, tag = 'smem constant byte address 0x4 - core index']
  #allocation1 [shape = 'u32[72,128]{1,0:T(1,128)}', space=vmem, size = 0x9000, scoped, tag = 'internal scratch']
  %s0 = inlined_call_operand.vmem [shape: f32[2,4,256], index: 0, kind: input, shape index: {}]
  %s1 = inlined_call_operand.vmem [shape: f32[32,2], index: 1, kind: input, shape index: {}]
  %s2 = inlined_call_operand.vmem [shape: f32[4,32], index: 2, kind: input, shape index: {}]
  %s3 = inlined_call_operand.vmem [shape: f32[4,1], index: 3, kind: input, shape index: {}]
  %s4 = inlined_call_operand.vmem [shape: f32[4,32], index: 4, kind: input, shape index: {}]
  %s5 = inlined_call_operand.vmem [shape: f32[4,1], index: 5, kind: input, shape index: {}]
  %s6 = inlined_call_operand.hbm [shape: f32[2,4,256], index: 6, kind: output, shape index: {}]
  %s7 = sld [smem:[#allocation0]]
  $region34: #{tpu_custom_call.1} parent=0
    _
  %s9 = ssub.s32 1, %s7
  %s10 = scalar_select 0, %s9, %s7
  $region1: #{tpu_custom_call.1} parent=0
    #allocation2 [shape = 'u8[8192]{0}', space=vmem, size = 0x2000, scoped, tag = 'output window, operand 0, single buffered']
    #allocation3 [shape = 's32[1]{0}', space=sflag, size = 0x4, scoped, tag = 'scoped memory for tpu_custom_call.1']
    %11 = vsyncpa [#allocation3], 0
    // Predicated region
    $region2: #{tpu_custom_call.1} parent=1 // pred_check
      _
    $region3: #{tpu_custom_call.1} parent=1 // pred_check_branch
      %13 = sbr.rel (0) target = $region5
    $region4: #{tpu_custom_call.1} parent=1 // pred_region
      _
    $region5: #{tpu_custom_call.1} parent=1 // pred_fallthru
      _
    // Predicated region
    $region6: #{tpu_custom_call.1} parent=1 // pred_check
      _
    $region7: #{tpu_custom_call.1} parent=1 // pred_check_branch
      %15 = sbr.rel (0) target = $region9
    $region8: #{tpu_custom_call.1} parent=1 // pred_region
      _
    $region9: #{tpu_custom_call.1} parent=1 // pred_fallthru
      _
    // Predicated region
    $region10: #{tpu_custom_call.1} parent=1 // pred_check
      _
    $region11: #{tpu_custom_call.1} parent=1 // pred_check_branch
      %17 = sbr.rel (0) target = $region13
    $region12: #{tpu_custom_call.1} parent=1 // pred_region
      _
    $region13: #{tpu_custom_call.1} parent=1 // pred_fallthru
      _
    // Predicated region
    $region14: #{tpu_custom_call.1} parent=1 // pred_check
      _
    $region15: #{tpu_custom_call.1} parent=1 // pred_check_branch
      %19 = sbr.rel (0) target = $region17
    $region16: #{tpu_custom_call.1} parent=1 // pred_region
      _
    $region17: #{tpu_custom_call.1} parent=1 // pred_fallthru
      _
    // Predicated region
    $region18: #{tpu_custom_call.1} parent=1 // pred_check
      _
    $region19: #{tpu_custom_call.1} parent=1 // pred_check_branch
      %21 = sbr.rel (0) target = $region21
    $region20: #{tpu_custom_call.1} parent=1 // pred_region
      _
    $region21: #{tpu_custom_call.1} parent=1 // pred_fallthru
      _
    // Predicated region
    $region22: #{tpu_custom_call.1} parent=1 // pred_check
      _
    $region23: #{tpu_custom_call.1} parent=1 // pred_check_branch
      %23 = sbr.rel (0) target = $region25
    $region24: #{tpu_custom_call.1} parent=1 // pred_region
      _
    $region25: #{tpu_custom_call.1} parent=1 // pred_fallthru
      _
    %v24 = vld [vmem:[%s1] sm:$0xff]
    %v25 = vld [vmem:[%s1 + $0x8] sm:$0xff]
    %v26 = vld [vmem:[%s1 + $0x10] sm:$0xff]
    %v27 = vld [vmem:[%s1 + $0x18] sm:$0xff]
    %v28 = vld [vmem:[%s2] sm:$0xf]
    %v29 = vld [vmem:[%s3] sm:$0xf]
    %31 = vset.pattern.permute.xlu0 0
    %32 = vperm.xlu0 %31, %v29
    %v33 = vpop.permute.xlu0 %32
    %vm35 = vcmask 261120
    %v37 = vsel %vm35, %v28, 0
    %39 = vmatpush.msra.mxu0 0.0
    %40 = vmatpush.msra.mxu0 0.0
    %41 = vmatpush.msra.mxu0 0.0
    %42 = vmatpush.msra.mxu0 0.0
    %43 = vmatpush.msra.mxu0 0.0
    %44 = vmatpush.msra.mxu0 0.0
    %45 = vmatpush.msra.mxu0 0.0
    %46 = vmatpush.msra.mxu0 0.0
    %47 = vmatpush.msra.mxu0 0.0
    %48 = vmatpush.msra.mxu0 0.0
    %49 = vmatpush.msra.mxu0 0.0
    %50 = vmatpush.msra.mxu0 0.0
    %51 = vmatpush.msra.mxu0 %v27
    %52 = vmatpush.msra.mxu0 %v26
    %53 = vmatpush.msra.mxu0 %v25
    %54 = vmatpush.msra.mxu0 %v24
    %55 = vmatmul.f32.gmra.mxu0 %v37
    %v56 = vpop.f32.mrf.mxu0
    %v57 = vadd.f32 %v33, %v56
    %58 = vdwg.mxu0
    %v59 = vadd.f32 %v57, 1.0
    %v60 = vld [vmem:[%s4] sm:$0xf]
    %v61 = vld [vmem:[%s5] sm:$0xf]
    %63 = vset.pattern.permute.xlu0 0
    %64 = vperm.xlu0 %63, %v61
    %v65 = vpop.permute.xlu0 %64
    %v68 = vsel %vm35, %v60, 0
    %70 = vmatpush.msra.mxu0 0.0
    %71 = vmatpush.msra.mxu0 0.0
    %72 = vmatpush.msra.mxu0 0.0
    %73 = vmatpush.msra.mxu0 0.0
    %74 = vmatpush.msra.mxu0 0.0
    %75 = vmatpush.msra.mxu0 0.0
    %76 = vmatpush.msra.mxu0 0.0
    %77 = vmatpush.msra.mxu0 0.0
    %78 = vmatpush.msra.mxu0 0.0
    %79 = vmatpush.msra.mxu0 0.0
    %80 = vmatpush.msra.mxu0 0.0
    %81 = vmatpush.msra.mxu0 0.0
    %82 = vmatpush.msra.mxu0 %v27
    %83 = vmatpush.msra.mxu0 %v26
    %84 = vmatpush.msra.mxu0 %v25
    %85 = vmatpush.msra.mxu0 %v24
    %86 = vmatmul.f32.gmra.mxu0 %v68
    %v87 = vpop.f32.mrf.mxu0
    %v88 = vadd.f32 %v65, %v87
    %89 = vdwg.mxu0
    %v90 = vld [vmem:[%s0] sm:$0xff]
    %92 = vset.pattern.permute.xlu0 0
    %93 = vperm.xlu0 %92, %v59
    %v94 = vpop.permute.xlu0 %93
    %v96 = vunpack.c.l.s4 839922192
    %v97 = vunpack.c.0.s8 %v96
    %v98 = vperm.slane %v94, %v97
    %v100 = vmul.f32 %v90, %v98
    %102 = vset.pattern.permute.xlu0 0
    %103 = vperm.xlu0 %102, %v88
    %v104 = vpop.permute.xlu0 %103
    %v106 = vunpack.c.l.s4 839922192
    %v107 = vunpack.c.0.s8 %v106
    %v108 = vperm.slane %v104, %v107
    %v110 = vadd.f32 %v100, %v108
    %111 = vst [vmem:[#allocation2] sm:$0xff] %v110
    %s112 = scalar_lea.vmem %s0, 8
    %v113 = vld [vmem:[%s112] sm:$0xff]
    %114 = vset.pattern.permute.xlu0 1
    %115 = vperm.xlu0 %114, %v59
    %v116 = vpop.permute.xlu0 %115
    %v118 = vunpack.c.l.s4 839922192
    %v119 = vunpack.c.0.s8 %v118
    %v120 = vperm.slane %v116, %v119
    %v122 = vmul.f32 %v113, %v120
    %123 = vset.pattern.permute.xlu0 1
    %124 = vperm.xlu0 %123, %v88
    %v125 = vpop.permute.xlu0 %124
    %v127 = vunpack.c.l.s4 839922192
    %v128 = vunpack.c.0.s8 %v127
    %v129 = vperm.slane %v125, %v128
    %v131 = vadd.f32 %v122, %v129
    %s132 = scalar_lea.vmem [#allocation2], 8
    %133 = vst [vmem:[%s132] sm:$0xff] %v131
    // Predicated region
    $region26: #{tpu_custom_call.1} parent=1 // pred_check
      _
    $region27: #{tpu_custom_call.1} parent=1 // pred_check_branch
      %135 = sbr.rel (0) target = $region29
    $region28: #{tpu_custom_call.1} parent=1 // pred_region
      %137 = vsyncadd [#allocation3], 0
      %s138 = sshll.u32 [#allocation2], 4
      %s139 = int_to_ptr.vmem [resolvable:$true] %s138
      %s140 = sshll.u32 %s6, 4
      %s141 = int_to_ptr.hbm [resolvable:$true] %s140
      %146 = dma.vmem_to_hbm [thread:$0]  %s139, 256, %s141, [#allocation3], 128, 128, 8
    $region29: #{tpu_custom_call.1} parent=1 // pred_fallthru
      _
    // Predicated region
    $region30: #{tpu_custom_call.1} parent=1 // pred_check
      _
    $region31: #{tpu_custom_call.1} parent=1 // pred_check_branch
      %148 = sbr.rel (0) target = $region33
    $region32: #{tpu_custom_call.1} parent=1 // pred_region
      %150 = dma.done [#allocation3], 256
    $region33: #{tpu_custom_call.1} parent=1 // pred_fallthru
      _
    %151 = vsyncpa [#allocation3], 1

</llo_original>
